<compile_context>
chip_gen: v7x
topology: tpu7x:2x2x1
jax: 0.10.0
libtpu: 0.0.40
codegen_flags: <defaults>
</compile_context>

<pallas_src>
import functools

import jax
import jax.numpy as jnp
from jax.experimental import pallas as pl
from jax.experimental.pallas import tpu as pltpu

_LANE = 128  # lane width; packed-bias segments are lane-aligned


def _round_up(n, m):
    return ((n + m - 1) // m) * m


def _cdiv(a, b):
    return (a + b - 1) // b


# ---------------------------------------------------------------------------
# Kernel
# ---------------------------------------------------------------------------
def mdn_kernel(pack, x_ref, w1_ref, w2_ref, w3_ref, wh_ref, b_ref, out_ref):
    """One batch tile of the fused MDN forward.

    pack = number of samples packed side-by-side per row (block-diag weights).
    Per-row layout of the output: pack consecutive segments of [pi | mu | sigma].
    """
    pd1 = w1_ref.shape[1]           # pack * 50
    pd2 = w2_ref.shape[1]           # pack * 100
    pd3 = w3_ref.shape[1]           # pack * 50
    pn3g = wh_ref.shape[1]          # pack * 3 * n_gaussians
    n3g = pn3g // pack
    ng = n3g // 3

    # Packed biases: lane-aligned segments.
    o2 = _round_up(pd1, _LANE)
    o3 = o2 + _round_up(pd2, _LANE)
    o4 = o3 + _round_up(pd3, _LANE)
    b1 = b_ref[:, 0:pd1]
    b2 = b_ref[:, o2:o2 + pd2]
    b3 = b_ref[:, o3:o3 + pd3]
    bh = b_ref[:, o4:o4 + pn3g]

    x = x_ref[...]

    # z_h: Linear+ReLU x3 (all f32 on the MXU). Block-diag weights keep each
    # packed sample in its own lane segment, so ReLU / bias-add "just work".
    h = jnp.maximum(jnp.dot(x, w1_ref[...], preferred_element_type=jnp.float32) + b1, 0.0)
    h = jnp.maximum(jnp.dot(h, w2_ref[...], preferred_element_type=jnp.float32) + b2, 0.0)
    h = jnp.maximum(jnp.dot(h, w3_ref[...], preferred_element_type=jnp.float32) + b3, 0.0)

    # Single fused head matmul -> (TILE, pack*3G) logits.
    logits = jnp.dot(h, wh_ref[...], preferred_element_type=jnp.float32) + bh

    lane = jax.lax.broadcasted_iota(jnp.int32, logits.shape, 1)

    # Lane masks per packed segment ([pi | mu | sigma] repeated `pack` times).
    is_pi = None
    is_mu = None
    seg_pi = []
    for s in range(pack):
        base = s * n3g
        pi_s = jnp.logical_and(lane >= base, lane < base + ng)
        mu_s = jnp.logical_and(lane >= base + ng, lane < base + 2 * ng)
        seg_pi.append(pi_s)
        is_pi = pi_s if is_pi is None else jnp.logical_or(is_pi, pi_s)
        is_mu = mu_s if is_mu is None else jnp.logical_or(is_mu, mu_s)

    # Stable softmax restricted to the pi lanes, per packed segment.
    m_b = None
    for s in range(pack):
        ms = jnp.max(jnp.where(seg_pi[s], logits, -jnp.inf), axis=-1, keepdims=True)
        m_b = ms if m_b is None else jnp.where(lane >= s * n3g, ms, m_b)

    shift = jnp.where(is_pi, m_b, 0.0)
    # Mask mu lanes before exp so large mu logits can never overflow (their
    # exp result is discarded by the final select anyway).
    z = jnp.where(is_mu, 0.0, logits - shift)
    e = jnp.exp(z)                  # pi lanes: exp(l - m); sigma lanes: exp(l)

    d_b = None
    for s in range(pack):
        ds = jnp.sum(jnp.where(seg_pi[s], e, 0.0), axis=-1, keepdims=True)
        d_b = ds if d_b is None else jnp.where(lane >= s * n3g, ds, d_b)
    inv = pl.reciprocal(d_b, approx=False)

    # pi lanes -> softmax, mu lanes -> identity, sigma lanes -> exp.
    out_ref[...] = jnp.where(is_pi, e * inv, jnp.where(is_mu, logits, e))


# ---------------------------------------------------------------------------
# Wrapper-side helpers
# ---------------------------------------------------------------------------
def _block_diag(w, pack):
    if pack == 1:
        return w
    ki, ko = w.shape
    out = jnp.zeros((pack * ki, pack * ko), w.dtype)
    for s in range(pack):
        out = out.at[s * ki:(s + 1) * ki, s * ko:(s + 1) * ko].set(w)
    return out


def _pack_bias(biases):
    """Pack bias rows into one (1, W) array at lane-aligned offsets."""
    offs, off = [], 0
    for b in biases[:-1]:
        offs.append(off)
        off += _round_up(b.shape[-1], _LANE)
    offs.append(off)
    width = off + biases[-1].shape[-1]
    packed = jnp.zeros((1, width), jnp.float32)
    for o, b in zip(offs, biases):
        packed = packed.at[:, o:o + b.shape[-1]].set(b)
    return packed


def _tpu_config():
    """(pack, vmem_limit_bytes, two_cores) for the current TPU generation."""
    try:
        kind = jax.devices()[0].device_kind.lower()
    except Exception:
        kind = ""
    is_v7 = ("v7" in kind) or ("7x" in kind)
    if is_v7:
        vmem_limit = 48 * 1024 * 1024          # 64 MiB/TensorCore physical
    elif any(g in kind for g in ("v4", "v5", "v6")):
        vmem_limit = 96 * 1024 * 1024          # 128 MiB physical
    else:
        vmem_limit = 32 * 1024 * 1024          # conservative fallback
    # 2-sample MXU packing only pays on 256-wide MXUs (v6e / v7x).
    pack = 2 if ("v6" in kind or is_v7) else 1
    two_cores = is_v7
    return pack, vmem_limit, two_cores


def _per_row_vmem_bytes(pack, nf, d1, d2, d3, n3g):
    """Approx. live VMEM bytes per tile row (lane-padded, x/out double-buffered)."""
    lt = lambda w: _round_up(w, _LANE)
    stream = 2 * lt(pack * nf) + 2 * lt(pack * n3g)
    act = lt(pack * d1) + lt(pack * d2) + lt(pack * d3) + 4 * lt(pack * n3g)
    return 4 * (stream + act) * 2              # 2x headroom for compiler temps


def _choose_tile_rows(n_rows, tile_rows, vmem_limit, two_cores, per_row_bytes):
    budget = max(vmem_limit - (4 << 20), 4 << 20)
    cap = max(8, (budget // per_row_bytes) // 8 * 8)
    cap = min(cap, 8192)
    if tile_rows is not None:
        cap = min(cap, max(8, _round_up(int(tile_rows), 8)))
    tile = min(cap, _round_up(n_rows, 8))
    if two_cores and n_rows > 8:
        # Guarantee >= 2 grid steps so both v7x TensorCores get work.
        tile = min(tile, _round_up(_cdiv(n_rows, 2), 8))
    return max(8, tile)


# ---------------------------------------------------------------------------
# Forward pass
# ---------------------------------------------------------------------------
def mdn_forward(x, params, tile_rows=None):
    """x: (B, n_feature) f32. params: dict of weights/biases. Returns (pi, mu, sigma)."""
    B, nf = x.shape
    d1 = params["w1"].shape[1]
    d2 = params["w2"].shape[1]
    d3 = params["w3"].shape[1]
    G = params["wpi"].shape[1]
    n3g = 3 * G

    pack, vmem_limit, two_cores = _tpu_config()

    # Fuse the three head weights/biases; build block-diag packed weights.
    wh = jnp.concatenate([params["wpi"], params["wmu"], params["wsig"]], axis=1)
    bh = jnp.concatenate([params["bpi"], params["bmu"], params["bsig"]], axis=1)
    w1p = _block_diag(params["w1"], pack)
    w2p = _block_diag(params["w2"], pack)
    w3p = _block_diag(params["w3"], pack)
    whp = _block_diag(wh, pack)
    bias = _pack_bias([jnp.tile(params["b1"], (1, pack)),
                       jnp.tile(params["b2"], (1, pack)),
                       jnp.tile(params["b3"], (1, pack)),
                       jnp.tile(bh, (1, pack))])

    # Batch packing + tiling: `pack` samples per row, tile over packed rows.
    R = _cdiv(B, pack)
    per_row = _per_row_vmem_bytes(pack, nf, d1, d2, d3, n3g)
    TILE_R = _choose_tile_rows(R, tile_rows, vmem_limit, two_cores, per_row)
    Rp = _round_up(R, TILE_R)
    Bp = Rp * pack
    if Bp != B:
        x = jnp.pad(x, ((0, Bp - B), (0, 0)))
    xp = x.reshape(Rp, pack * nf)
    grid = (Rp // TILE_R,)

    def full_spec(a):
        return pl.BlockSpec(a.shape, lambda i: (0,) * a.ndim)

    flops = 2 * Bp * (nf * d1 + d1 * d2 + d2 * d3 + d3 * n3g)
    bytes_accessed = 4 * (Bp * nf + w1p.size + w2p.size + w3p.size + whp.size
                          + bias.size + Bp * n3g)

    out = pl.pallas_call(
        functools.partial(mdn_kernel, pack),
        out_shape=jax.ShapeDtypeStruct((Rp, pack * n3g), jnp.float32),
        grid=grid,
        in_specs=[
            pl.BlockSpec((TILE_R, pack * nf), lambda i: (i, 0)),   # x: tiled over batch
            full_spec(w1p),                                        # weights stay resident
            full_spec(w2p),
            full_spec(w3p),
            full_spec(whp),
            full_spec(bias),
        ],
        out_specs=pl.BlockSpec((TILE_R, pack * n3g), lambda i: (i, 0)),
        compiler_params=pltpu.CompilerParams(
            dimension_semantics=("parallel",),
            vmem_limit_bytes=vmem_limit,
        ),
        cost_estimate=pl.CostEstimate(
            flops=flops,
            transcendentals=Bp * n3g,
            bytes_accessed=bytes_accessed,
        ),
    )(xp, w1p, w2p, w3p, whp, bias)

    # De-interleave the packed rows (free row-major reshape), then split heads.
    out = out.reshape(Bp, n3g)
    pi = out[:B, 0:G]
    mu = out[:B, G:2 * G]
    sigma = out[:B, 2 * G:3 * G]
    return pi, mu, sigma


# ---------------------------------------------------------------------------
# Parameters / reference
# ---------------------------------------------------------------------------
def init_params(key, n_feature, n_gaussians):
    """Deterministic synthetic parameter init (weights stored as (in, out))."""
    ks = jax.random.split(key, 12)

    def w(k, fan_in, fan_out):
        scale = 1.0 / jnp.sqrt(jnp.float32(fan_in))
        return jax.random.uniform(k, (fan_in, fan_out), jnp.float32, -scale, scale)

    def b(k, fan_in, fan_out):
        scale = 1.0 / jnp.sqrt(jnp.float32(fan_in))
        return jax.random.uniform(k, (1, fan_out), jnp.float32, -scale, scale)

    return {
        "w1": w(ks[0], n_feature, 50),  "b1": b(ks[1], n_feature, 50),
        "w2": w(ks[2], 50, 100),        "b2": b(ks[3], 50, 100),
        "w3": w(ks[4], 100, 50),        "b3": b(ks[5], 100, 50),
        "wpi": w(ks[6], 50, n_gaussians),  "bpi": b(ks[7], 50, n_gaussians),
        "wmu": w(ks[8], 50, n_gaussians),  "bmu": b(ks[9], 50, n_gaussians),
        "wsig": w(ks[10], 50, n_gaussians), "bsig": b(ks[11], 50, n_gaussians),
    }


def mdn_reference(x, p):
    """Pure-JAX reference matching the PyTorch forward."""
    h = jnp.maximum(x @ p["w1"] + p["b1"], 0.0)
    h = jnp.maximum(h @ p["w2"] + p["b2"], 0.0)
    h = jnp.maximum(h @ p["w3"] + p["b3"], 0.0)
    pi = jax.nn.softmax(h @ p["wpi"] + p["bpi"], axis=-1)
    mu = h @ p["wmu"] + p["bmu"]
    sigma = jnp.exp(h @ p["wsig"] + p["bsig"])
    return pi, mu, sigma


if __name__ == "__main__":
    key = jax.random.PRNGKey(0)
    k_x, k_p, k_x2 = jax.random.split(key, 3)

    B, n_feature, n_gaussians = 8, 13, 5   # Boston housing: 13 features
    x = jax.random.normal(k_x, (B, n_feature), jnp.float32)
    params = init_params(k_p, n_feature, n_gaussians)

    fwd = jax.jit(mdn_forward, static_argnames=("tile_rows",))

    # Small-batch run (single grid step, exercises padding of packed rows).
    pi, mu, sigma = jax.block_until_ready(fwd(x, params))
    pi_r, mu_r, sigma_r = mdn_reference(x, params)
    assert jnp.allclose(pi, pi_r, atol=1e-5, rtol=1e-5)
    assert jnp.allclose(mu, mu_r, atol=1e-5, rtol=1e-5)
    assert jnp.allclose(sigma, sigma_r, atol=1e-5, rtol=1e-5)
    assert jnp.allclose(jnp.sum(pi, axis=-1), 1.0, atol=1e-5)

    # Larger batch with default (generation-sized) tiles.
    B2 = 1000
    x2 = jax.random.normal(k_x2, (B2, n_feature), jnp.float32)
    pi2, mu2, sigma2 = jax.block_until_ready(fwd(x2, params))
    pi2_r, mu2_r, sigma2_r = mdn_reference(x2, params)
    assert jnp.allclose(pi2, pi2_r, atol=1e-5, rtol=1e-5)
    assert jnp.allclose(mu2, mu2_r, atol=1e-5, rtol=1e-5)
    assert jnp.allclose(sigma2, sigma2_r, atol=1e-5, rtol=1e-5)

    # Small explicit tile to exercise a multi-step grid + batch padding.
    pi3, mu3, sigma3 = jax.block_until_ready(fwd(x2, params, tile_rows=128))
    assert jnp.allclose(pi3, pi2_r, atol=1e-5, rtol=1e-5)
    assert jnp.allclose(mu3, mu2_r, atol=1e-5, rtol=1e-5)
    assert jnp.allclose(sigma3, sigma2_r, atol=1e-5, rtol=1e-5)

    print("KERNEL_OK")
</pallas_src>

<mosaic_0001>
module attributes {stable_mosaic.version = 11 : i64} {
  func.func @mdn_kernel(%arg0: i32, %arg1: memref<8x13xf32, #tpu.memory_space<vmem>>, %arg2: memref<13x50xf32, #tpu.memory_space<vmem>>, %arg3: memref<50x100xf32, #tpu.memory_space<vmem>>, %arg4: memref<100x50xf32, #tpu.memory_space<vmem>>, %arg5: memref<50x15xf32, #tpu.memory_space<vmem>>, %arg6: memref<1x399xf32, #tpu.memory_space<vmem>>, %arg7: memref<8x15xf32, #tpu.memory_space<vmem>>) attributes {dimension_semantics = [#tpu.dimension_semantics<parallel>], iteration_bounds = array<i64: 1>, scalar_prefetch = 0 : i64, scratch_operands = 0 : i64, tpu.core_type = #tpu.core_type<tc>, window_params = [{transform_indices = @transform_0, window_bounds = array<i64: 8, 13>}, {pipeline_mode = #tpu.pipeline_mode<synchronous>, transform_indices = @transform_1, window_bounds = array<i64: 13, 50>}, {pipeline_mode = #tpu.pipeline_mode<synchronous>, transform_indices = @transform_2, window_bounds = array<i64: 50, 100>}, {pipeline_mode = #tpu.pipeline_mode<synchronous>, transform_indices = @transform_3, window_bounds = array<i64: 100, 50>}, {pipeline_mode = #tpu.pipeline_mode<synchronous>, transform_indices = @transform_4, window_bounds = array<i64: 50, 15>}, {pipeline_mode = #tpu.pipeline_mode<synchronous>, transform_indices = @transform_5, window_bounds = array<i64: 1, 399>}, {transform_indices = @transform_6, window_bounds = array<i64: 8, 15>}]} {
    %c0 = arith.constant 0 : index
    %c0_0 = arith.constant 0 : index
    %0 = vector.load %arg6[%c0, %c0_0] : memref<1x399xf32, #tpu.memory_space<vmem>>, vector<1x50xf32>
    %c0_1 = arith.constant 0 : index
    %c128 = arith.constant 128 : index
    %1 = vector.load %arg6[%c0_1, %c128] : memref<1x399xf32, #tpu.memory_space<vmem>>, vector<1x100xf32>
    %c0_2 = arith.constant 0 : index
    %c256 = arith.constant 256 : index
    %2 = vector.load %arg6[%c0_2, %c256] : memref<1x399xf32, #tpu.memory_space<vmem>>, vector<1x50xf32>
    %c0_3 = arith.constant 0 : index
    %c384 = arith.constant 384 : index
    %3 = vector.load %arg6[%c0_3, %c384] : memref<1x399xf32, #tpu.memory_space<vmem>>, vector<1x15xf32>
    %c0_4 = arith.constant 0 : index
    %c0_5 = arith.constant 0 : index
    %4 = vector.load %arg1[%c0_4, %c0_5] : memref<8x13xf32, #tpu.memory_space<vmem>>, vector<8x13xf32>
    %c0_6 = arith.constant 0 : index
    %c0_7 = arith.constant 0 : index
    %5 = vector.load %arg2[%c0_6, %c0_7] : memref<13x50xf32, #tpu.memory_space<vmem>>, vector<13x50xf32>
    %cst = arith.constant dense<0.000000e+00> : vector<8x50xf32>
    %6 = tpu.matmul %4, %5, %cst {dimension_numbers = #tpu.dot_dimension_numbers<[1], [0], [0], [1], [0, 0, 1, 1], [], []>} : vector<8x13xf32>, vector<13x50xf32>, vector<8x50xf32> -> vector<8x50xf32>
    %7 = vector.broadcast %0 : vector<1x50xf32> to vector<8x50xf32>
    %8 = arith.addf %6, %7 : vector<8x50xf32>
    %cst_8 = arith.constant 0.000000e+00 : f32
    %9 = vector.broadcast %cst_8 : f32 to vector<8x50xf32>
    %10 = arith.maximumf %8, %9 : vector<8x50xf32>
    %c0_9 = arith.constant 0 : index
    %c0_10 = arith.constant 0 : index
    %11 = vector.load %arg3[%c0_9, %c0_10] : memref<50x100xf32, #tpu.memory_space<vmem>>, vector<50x100xf32>
    %cst_11 = arith.constant dense<0.000000e+00> : vector<8x100xf32>
    %12 = tpu.matmul %10, %11, %cst_11 {dimension_numbers = #tpu.dot_dimension_numbers<[1], [0], [0], [1], [0, 0, 1, 1], [], []>} : vector<8x50xf32>, vector<50x100xf32>, vector<8x100xf32> -> vector<8x100xf32>
    %13 = vector.broadcast %1 : vector<1x100xf32> to vector<8x100xf32>
    %14 = arith.addf %12, %13 : vector<8x100xf32>
    %cst_12 = arith.constant 0.000000e+00 : f32
    %15 = vector.broadcast %cst_12 : f32 to vector<8x100xf32>
    %16 = arith.maximumf %14, %15 : vector<8x100xf32>
    %c0_13 = arith.constant 0 : index
    %c0_14 = arith.constant 0 : index
    %17 = vector.load %arg4[%c0_13, %c0_14] : memref<100x50xf32, #tpu.memory_space<vmem>>, vector<100x50xf32>
    %cst_15 = arith.constant dense<0.000000e+00> : vector<8x50xf32>
    %18 = tpu.matmul %16, %17, %cst_15 {dimension_numbers = #tpu.dot_dimension_numbers<[1], [0], [0], [1], [0, 0, 1, 1], [], []>} : vector<8x100xf32>, vector<100x50xf32>, vector<8x50xf32> -> vector<8x50xf32>
    %19 = vector.broadcast %2 : vector<1x50xf32> to vector<8x50xf32>
    %20 = arith.addf %18, %19 : vector<8x50xf32>
    %cst_16 = arith.constant 0.000000e+00 : f32
    %21 = vector.broadcast %cst_16 : f32 to vector<8x50xf32>
    %22 = arith.maximumf %20, %21 : vector<8x50xf32>
    %c0_17 = arith.constant 0 : index
    %c0_18 = arith.constant 0 : index
    %23 = vector.load %arg5[%c0_17, %c0_18] : memref<50x15xf32, #tpu.memory_space<vmem>>, vector<50x15xf32>
    %cst_19 = arith.constant dense<0.000000e+00> : vector<8x15xf32>
    %24 = tpu.matmul %22, %23, %cst_19 {dimension_numbers = #tpu.dot_dimension_numbers<[1], [0], [0], [1], [0, 0, 1, 1], [], []>} : vector<8x50xf32>, vector<50x15xf32>, vector<8x15xf32> -> vector<8x15xf32>
    %25 = vector.broadcast %3 : vector<1x15xf32> to vector<8x15xf32>
    %26 = arith.addf %24, %25 : vector<8x15xf32>
    %27 = tpu.iota {dimensions = array<i32: 1>} : vector<8x15xi32>
    %c0_i32 = arith.constant 0 : i32
    %28 = vector.broadcast %c0_i32 : i32 to vector<8x15xi32>
    %29 = arith.cmpi sge, %27, %28 : vector<8x15xi32>
    %c5_i32 = arith.constant 5 : i32
    %30 = vector.broadcast %c5_i32 : i32 to vector<8x15xi32>
    %31 = arith.cmpi slt, %27, %30 : vector<8x15xi32>
    %32 = arith.andi %29, %31 : vector<8x15xi1>
    %c5_i32_20 = arith.constant 5 : i32
    %33 = vector.broadcast %c5_i32_20 : i32 to vector<8x15xi32>
    %34 = arith.cmpi sge, %27, %33 : vector<8x15xi32>
    %c10_i32 = arith.constant 10 : i32
    %35 = vector.broadcast %c10_i32 : i32 to vector<8x15xi32>
    %36 = arith.cmpi slt, %27, %35 : vector<8x15xi32>
    %37 = arith.andi %34, %36 : vector<8x15xi1>
    %cst_21 = arith.constant 0xFF800000 : f32
    %38 = vector.broadcast %cst_21 : f32 to vector<8x15xf32>
    %39 = arith.select %32, %26, %38 : vector<8x15xi1>, vector<8x15xf32>
    %cst_22 = arith.constant dense<0xFF800000> : vector<8xf32>
    %40 = vector.multi_reduction <maximumf>, %39, %cst_22 [1] : vector<8x15xf32> to vector<8xf32>
    %41 = vector.shape_cast %40 : vector<8xf32> to vector<8x1xf32>
    %cst_23 = arith.constant 0.000000e+00 : f32
    %42 = vector.shape_cast %41 : vector<8x1xf32> to vector<8x1xf32>
    %43 = vector.broadcast %42 : vector<8x1xf32> to vector<8x15xf32>
    %44 = vector.broadcast %cst_23 : f32 to vector<8x15xf32>
    %45 = arith.select %32, %43, %44 : vector<8x15xi1>, vector<8x15xf32>
    %46 = arith.subf %26, %45 : vector<8x15xf32>
    %cst_24 = arith.constant 0.000000e+00 : f32
    %47 = vector.broadcast %cst_24 : f32 to vector<8x15xf32>
    %48 = arith.select %37, %47, %46 : vector<8x15xi1>, vector<8x15xf32>
    %49 = math.exp %48 : vector<8x15xf32>
    %cst_25 = arith.constant 0.000000e+00 : f32
    %50 = vector.broadcast %cst_25 : f32 to vector<8x15xf32>
    %51 = arith.select %32, %49, %50 : vector<8x15xi1>, vector<8x15xf32>
    %cst_26 = arith.constant dense<0.000000e+00> : vector<8xf32>
    %52 = vector.multi_reduction <add>, %51, %cst_26 [1] : vector<8x15xf32> to vector<8xf32>
    %53 = vector.shape_cast %52 : vector<8xf32> to vector<8x1xf32>
    %54 = tpu.reciprocal %53 : vector<8x1xf32> -> vector<8x1xf32>
    %55 = vector.broadcast %54 : vector<8x1xf32> to vector<8x15xf32>
    %56 = arith.mulf %49, %55 : vector<8x15xf32>
    %57 = arith.select %37, %26, %49 : vector<8x15xi1>, vector<8x15xf32>
    %58 = arith.select %32, %56, %57 : vector<8x15xi1>, vector<8x15xf32>
    %c0_27 = arith.constant 0 : index
    %c0_28 = arith.constant 0 : index
    %59 = vector.load %arg7[%c0_27, %c0_28] : memref<8x15xf32, #tpu.memory_space<vmem>>, vector<8x15xf32>
    tpu.vector_store %arg7[%c0_27, %c0_28], %58 {strides = array<i32>} : memref<8x15xf32, #tpu.memory_space<vmem>>, vector<8x15xf32>,
    return
  }
  func.func @transform_0(%arg0: i32) -> (i32, i32) {
    %c0_i32 = arith.constant 0 : i32
    %c0_i32_0 = arith.constant 0 : i32
    return %arg0, %c0_i32 : i32, i32
  }
  func.func @transform_1(%arg0: i32) -> (i32, i32) {
    %c0_i32 = arith.constant 0 : i32
    %c0_i32_0 = arith.constant 0 : i32
    %c0_i32_1 = arith.constant 0 : i32
    return %c0_i32, %c0_i32_0 : i32, i32
  }
  func.func @transform_2(%arg0: i32) -> (i32, i32) {
    %c0_i32 = arith.constant 0 : i32
    %c0_i32_0 = arith.constant 0 : i32
    %c0_i32_1 = arith.constant 0 : i32
    return %c0_i32, %c0_i32_0 : i32, i32
  }
  func.func @transform_3(%arg0: i32) -> (i32, i32) {
    %c0_i32 = arith.constant 0 : i32
    %c0_i32_0 = arith.constant 0 : i32
    %c0_i32_1 = arith.constant 0 : i32
    return %c0_i32, %c0_i32_0 : i32, i32
  }
  func.func @transform_4(%arg0: i32) -> (i32, i32) {
    %c0_i32 = arith.constant 0 : i32
    %c0_i32_0 = arith.constant 0 : i32
    %c0_i32_1 = arith.constant 0 : i32
    return %c0_i32, %c0_i32_0 : i32, i32
  }
  func.func @transform_5(%arg0: i32) -> (i32, i32) {
    %c0_i32 = arith.constant 0 : i32
    %c0_i32_0 = arith.constant 0 : i32
    %c0_i32_1 = arith.constant 0 : i32
    return %c0_i32, %c0_i32_0 : i32, i32
  }
  func.func @transform_6(%arg0: i32) -> (i32, i32) {
    %c0_i32 = arith.constant 0 : i32
    %c0_i32_0 = arith.constant 0 : i32
    return %arg0, %c0_i32 : i32, i32
  }
}

</mosaic_0001>

<llo_original>
// kernel: mdn_forward.1
$region0: #{mdn_forward.1}
  #allocation0 [shape = 'u32[]', space=smem, size = 0x4, offset = 0x4, fixed_abs, tag = 'smem constant byte address 0x4 - core index']
  #allocation1 [shape = 'u32[144,128]{1,0:T(1,128)}', space=vmem, size = 0x12000, scoped, tag = 'internal scratch']
  %s0 = inlined_call_operand.vmem [shape: f32[8,13], index: 0, kind: input, shape index: {}]
  %s1 = inlined_call_operand.vmem [shape: f32[13,50], index: 1, kind: input, shape index: {}]
  %s2 = inlined_call_operand.vmem [shape: f32[50,100], index: 2, kind: input, shape index: {}]
  %s3 = inlined_call_operand.vmem [shape: f32[100,50], index: 3, kind: input, shape index: {}]
  %s4 = inlined_call_operand.vmem [shape: f32[50,15], index: 4, kind: input, shape index: {}]
  %s5 = inlined_call_operand.vmem [shape: f32[1,399], index: 5, kind: input, shape index: {}]
  %s6 = inlined_call_operand.vmem [shape: f32[8,15], index: 6, kind: output, shape index: {}]
  %s7 = sld [smem:[#allocation0]]
  $region34: #{mdn_forward.1} parent=0
    _
  %s9 = ssub.s32 1, %s7
  %s10 = scalar_select 0, %s9, %s7
  // Predicated region
  $region2: #{mdn_forward.1} parent=0 // pred_check
    _
  $region3: #{mdn_forward.1} parent=0 // pred_check_branch
    %12 = sbr.rel (0) target = $region5
  $region4: #{mdn_forward.1} parent=0 // pred_region
    _
  $region5: #{mdn_forward.1} parent=0 // pred_fallthru
    _
  // Predicated region
  $region6: #{mdn_forward.1} parent=0 // pred_check
    _
  $region7: #{mdn_forward.1} parent=0 // pred_check_branch
    %14 = sbr.rel (0) target = $region9
  $region8: #{mdn_forward.1} parent=0 // pred_region
    _
  $region9: #{mdn_forward.1} parent=0 // pred_fallthru
    _
  // Predicated region
  $region10: #{mdn_forward.1} parent=0 // pred_check
    _
  $region11: #{mdn_forward.1} parent=0 // pred_check_branch
    %16 = sbr.rel (0) target = $region13
  $region12: #{mdn_forward.1} parent=0 // pred_region
    _
  $region13: #{mdn_forward.1} parent=0 // pred_fallthru
    _
  // Predicated region
  $region14: #{mdn_forward.1} parent=0 // pred_check
    _
  $region15: #{mdn_forward.1} parent=0 // pred_check_branch
    %18 = sbr.rel (0) target = $region17
  $region16: #{mdn_forward.1} parent=0 // pred_region
    _
  $region17: #{mdn_forward.1} parent=0 // pred_fallthru
    _
  // Predicated region
  $region18: #{mdn_forward.1} parent=0 // pred_check
    _
  $region19: #{mdn_forward.1} parent=0 // pred_check_branch
    %20 = sbr.rel (0) target = $region21
  $region20: #{mdn_forward.1} parent=0 // pred_region
    _
  $region21: #{mdn_forward.1} parent=0 // pred_fallthru
    _
  // Predicated region
  $region22: #{mdn_forward.1} parent=0 // pred_check
    _
  $region23: #{mdn_forward.1} parent=0 // pred_check_branch
    %22 = sbr.rel (0) target = $region25
  $region24: #{mdn_forward.1} parent=0 // pred_region
    _
  $region25: #{mdn_forward.1} parent=0 // pred_fallthru
    _
  %v23 = vld [vmem:[%s5] sm:$0x1]
  %v24 = vld [vmem:[%s5 + $0x1] sm:$0x1]
  %v25 = vld [vmem:[%s5 + $0x2] sm:$0x1]
  %v26 = vld [vmem:[%s5 + $0x3] sm:$0x1]
  %v27 = vld [vmem:[%s0] sm:$0xff]
  %v28 = vld [vmem:[%s1] sm:$0xff]
  %v29 = vld [vmem:[%s1 + $0x8] sm:$0x1f]
  %v31 = vlaneseq
  %v32 = vshrl.u32 %v31, 7
  %v33 = vsub.s32 0, %v32
  %v34 = vrot.slane %v23, %v33
  %vm36 = vcmask 105472
  %v38 = vsel %vm36, %v27, 0
  %vm40 = vcmask 1044480
  %v42 = vsel %vm40, %v29, 0
  %44 = vmatprep.subr.mxu0 0.0
  %45 = vmatpush1.msra.mxu0 %v28
  %46 = vmatprep.subr.mxu0 0.0
  %47 = vmatpush1.msra.mxu0 %v42
  %48 = vmatprep.subr.mxu0 0.0
  %49 = vmatpush1.msra.mxu0 0.0
  %50 = vmatprep.subr.mxu0 0.0
  %51 = vmatpush1.msra.mxu0 0.0
  %52 = vmatprep.subr.mxu0 0.0
  %53 = vmatpush1.msra.mxu0 0.0
  %54 = vmatprep.subr.mxu0 0.0
  %55 = vmatpush1.msra.mxu0 0.0
  %56 = vmatprep.subr.mxu0 0.0
  %57 = vmatpush1.msra.mxu0 0.0
  %58 = vmatprep.subr.mxu0 0.0
  %59 = vmatpush1.msra.mxu0 0.0
  %60 = vmatprep.subr.mxu0 0.0
  %61 = vmatpush1.msra.mxu0 0.0
  %62 = vmatprep.subr.mxu0 0.0
  %63 = vmatpush1.msra.mxu0 0.0
  %64 = vmatprep.subr.mxu0 0.0
  %65 = vmatpush1.msra.mxu0 0.0
  %66 = vmatprep.subr.mxu0 0.0
  %67 = vmatpush1.msra.mxu0 0.0
  %68 = vmatprep.subr.mxu0 0.0
  %69 = vmatpush1.msra.mxu0 0.0
  %70 = vmatprep.subr.mxu0 0.0
  %71 = vmatpush1.msra.mxu0 0.0
  %72 = vmatprep.subr.mxu0 0.0
  %73 = vmatpush1.msra.mxu0 0.0
  %74 = vmatprep.subr.mxu0 0.0
  %75 = vmatpush1.msra.mxu0 0.0
  %76 = vmatprep.subr.mxu0 0.0
  %77 = vmatpush1.msra.mxu0 0.0
  %78 = vmatprep.subr.mxu0 0.0
  %79 = vmatpush1.msra.mxu0 0.0
  %80 = vmatprep.subr.mxu0 0.0
  %81 = vmatpush1.msra.mxu0 0.0
  %82 = vmatprep.subr.mxu0 0.0
  %83 = vmatpush1.msra.mxu0 0.0
  %84 = vmatprep.subr.mxu0 0.0
  %85 = vmatpush1.msra.mxu0 0.0
  %86 = vmatprep.subr.mxu0 0.0
  %87 = vmatpush1.msra.mxu0 0.0
  %88 = vmatprep.subr.mxu0 0.0
  %89 = vmatpush1.msra.mxu0 0.0
  %90 = vmatprep.subr.mxu0 0.0
  %91 = vmatpush1.msra.mxu0 0.0
  %92 = vmatprep.subr.mxu0 0.0
  %93 = vmatpush1.msra.mxu0 0.0
  %94 = vmatprep.subr.mxu0 0.0
  %95 = vmatpush1.msra.mxu0 0.0
  %96 = vmatprep.subr.mxu0 0.0
  %97 = vmatpush1.msra.mxu0 0.0
  %98 = vmatprep.subr.mxu0 0.0
  %99 = vmatpush1.msra.mxu0 0.0
  %100 = vmatprep.subr.mxu0 0.0
  %101 = vmatpush1.msra.mxu0 0.0
  %102 = vmatprep.subr.mxu0 0.0
  %103 = vmatpush1.msra.mxu0 0.0
  %104 = vmatprep.subr.mxu0 0.0
  %105 = vmatpush1.msra.mxu0 0.0
  %106 = vmatprep.subr.mxu0 0.0
  %107 = vmatpush1.msra.mxu0 0.0
  %108 = vmatprep.mubr.f32.mxu0 0.0
  %109 = vmatmul.mubr.f32.gmra.mrb[0].mxu0 %v38
  %v110 = vpop.f32.mrb[0].mxu0
  %v111 = vadd.f32 %v34, %v110
  %v112 = vpop.f32.mrb[0].mxu0
  %113 = vdwg.mxu0
  %v114 = vmax.f32 %v111, 0.0
  %v115 = vld [vmem:[%s2] sm:$0xff]
  %v116 = vld [vmem:[%s2 + $0x8] sm:$0xff]
  %v117 = vld [vmem:[%s2 + $0x10] sm:$0xff]
  %v118 = vld [vmem:[%s2 + $0x18] sm:$0xff]
  %v119 = vld [vmem:[%s2 + $0x20] sm:$0xff]
  %v120 = vld [vmem:[%s2 + $0x28] sm:$0xff]
  %v121 = vld [vmem:[%s2 + $0x30] sm:$0x3]
  %v123 = vlaneseq
  %v124 = vshrl.u32 %v123, 7
  %v125 = vsub.s32 0, %v124
  %v126 = vrot.slane %v24, %v125
  %vm128 = vcmask 408576
  %v130 = vsel %vm128, %v114, 0
  %vm132 = vcmask 1041408
  %v134 = vsel %vm132, %v121, 0
  %136 = vmatprep.subr.mxu0 0.0
  %137 = vmatpush1.msra.mxu0 %v115
  %138 = vmatprep.subr.mxu0 0.0
  %139 = vmatpush1.msra.mxu0 %v116
  %140 = vmatprep.subr.mxu0 0.0
  %141 = vmatpush1.msra.mxu0 %v117
  %142 = vmatprep.subr.mxu0 0.0
  %143 = vmatpush1.msra.mxu0 %v118
  %144 = vmatprep.subr.mxu0 0.0
  %145 = vmatpush1.msra.mxu0 %v119
  %146 = vmatprep.subr.mxu0 0.0
  %147 = vmatpush1.msra.mxu0 %v120
  %148 = vmatprep.subr.mxu0 0.0
  %149 = vmatpush1.msra.mxu0 %v134
  %150 = vmatprep.subr.mxu0 0.0
  %151 = vmatpush1.msra.mxu0 0.0
  %152 = vmatprep.subr.mxu0 0.0
  %153 = vmatpush1.msra.mxu0 0.0
  %154 = vmatprep.subr.mxu0 0.0
  %155 = vmatpush1.msra.mxu0 0.0
  %156 = vmatprep.subr.mxu0 0.0
  %157 = vmatpush1.msra.mxu0 0.0
  %158 = vmatprep.subr.mxu0 0.0
  %159 = vmatpush1.msra.mxu0 0.0
  %160 = vmatprep.subr.mxu0 0.0
  %161 = vmatpush1.msra.mxu0 0.0
  %162 = vmatprep.subr.mxu0 0.0
  %163 = vmatpush1.msra.mxu0 0.0
  %164 = vmatprep.subr.mxu0 0.0
  %165 = vmatpush1.msra.mxu0 0.0
  %166 = vmatprep.subr.mxu0 0.0
  %167 = vmatpush1.msra.mxu0 0.0
  %168 = vmatprep.subr.mxu0 0.0
  %169 = vmatpush1.msra.mxu0 0.0
  %170 = vmatprep.subr.mxu0 0.0
  %171 = vmatpush1.msra.mxu0 0.0
  %172 = vmatprep.subr.mxu0 0.0
  %173 = vmatpush1.msra.mxu0 0.0
  %174 = vmatprep.subr.mxu0 0.0
  %175 = vmatpush1.msra.mxu0 0.0
  %176 = vmatprep.subr.mxu0 0.0
  %177 = vmatpush1.msra.mxu0 0.0
  %178 = vmatprep.subr.mxu0 0.0
  %179 = vmatpush1.msra.mxu0 0.0
  %180 = vmatprep.subr.mxu0 0.0
  %181 = vmatpush1.msra.mxu0 0.0
  %182 = vmatprep.subr.mxu0 0.0
  %183 = vmatpush1.msra.mxu0 0.0
  %184 = vmatprep.subr.mxu0 0.0
  %185 = vmatpush1.msra.mxu0 0.0
  %186 = vmatprep.subr.mxu0 0.0
  %187 = vmatpush1.msra.mxu0 0.0
  %188 = vmatprep.subr.mxu0 0.0
  %189 = vmatpush1.msra.mxu0 0.0
  %190 = vmatprep.subr.mxu0 0.0
  %191 = vmatpush1.msra.mxu0 0.0
  %192 = vmatprep.subr.mxu0 0.0
  %193 = vmatpush1.msra.mxu0 0.0
  %194 = vmatprep.subr.mxu0 0.0
  %195 = vmatpush1.msra.mxu0 0.0
  %196 = vmatprep.subr.mxu0 0.0
  %197 = vmatpush1.msra.mxu0 0.0
  %198 = vmatprep.subr.mxu0 0.0
  %199 = vmatpush1.msra.mxu0 0.0
  %200 = vmatprep.mubr.f32.mxu0 0.0
  %201 = vmatmul.mubr.f32.gmra.mrb[0].mxu0 %v130
  %v202 = vpop.f32.mrb[0].mxu0
  %v203 = vadd.f32 %v126, %v202
  %v204 = vpop.f32.mrb[0].mxu0
  %205 = vdwg.mxu0
  %v206 = vmax.f32 %v203, 0.0
  %v207 = vld [vmem:[%s3] sm:$0xff]
  %v208 = vld [vmem:[%s3 + $0x8] sm:$0xff]
  %v209 = vld [vmem:[%s3 + $0x10] sm:$0xff]
  %v210 = vld [vmem:[%s3 + $0x18] sm:$0xff]
  %v211 = vld [vmem:[%s3 + $0x20] sm:$0xff]
  %v212 = vld [vmem:[%s3 + $0x28] sm:$0xff]
  %v213 = vld [vmem:[%s3 + $0x30] sm:$0xff]
  %v214 = vld [vmem:[%s3 + $0x38] sm:$0xff]
  %v215 = vld [vmem:[%s3 + $0x40] sm:$0xff]
  %v216 = vld [vmem:[%s3 + $0x48] sm:$0xff]
  %v217 = vld [vmem:[%s3 + $0x50] sm:$0xff]
  %v218 = vld [vmem:[%s3 + $0x58] sm:$0xff]
  %v219 = vld [vmem:[%s3 + $0x60] sm:$0xf]
  %v221 = vlaneseq
  %v222 = vshrl.u32 %v221, 7
  %v223 = vsub.s32 0, %v222
  %v224 = vrot.slane %v25, %v223
  %vm226 = vcmask 818176
  %v228 = vsel %vm226, %v206, 0
  %vm230 = vcmask 1043456
  %v232 = vsel %vm230, %v219, 0
  %234 = vmatprep.subr.mxu0 0.0
  %235 = vmatpush1.msra.mxu0 %v207
  %236 = vmatprep.subr.mxu0 0.0
  %237 = vmatpush1.msra.mxu0 %v208
  %238 = vmatprep.subr.mxu0 0.0
  %239 = vmatpush1.msra.mxu0 %v209
  %240 = vmatprep.subr.mxu0 0.0
  %241 = vmatpush1.msra.mxu0 %v210
  %242 = vmatprep.subr.mxu0 0.0
  %243 = vmatpush1.msra.mxu0 %v211
  %244 = vmatprep.subr.mxu0 0.0
  %245 = vmatpush1.msra.mxu0 %v212
  %246 = vmatprep.subr.mxu0 0.0
  %247 = vmatpush1.msra.mxu0 %v213
  %248 = vmatprep.subr.mxu0 0.0
  %249 = vmatpush1.msra.mxu0 %v214
  %250 = vmatprep.subr.mxu0 0.0
  %251 = vmatpush1.msra.mxu0 %v215
  %252 = vmatprep.subr.mxu0 0.0
  %253 = vmatpush1.msra.mxu0 %v216
  %254 = vmatprep.subr.mxu0 0.0
  %255 = vmatpush1.msra.mxu0 %v217
  %256 = vmatprep.subr.mxu0 0.0
  %257 = vmatpush1.msra.mxu0 %v218
  %258 = vmatprep.subr.mxu0 0.0
  %259 = vmatpush1.msra.mxu0 %v232
  %260 = vmatprep.subr.mxu0 0.0
  %261 = vmatpush1.msra.mxu0 0.0
  %262 = vmatprep.subr.mxu0 0.0
  %263 = vmatpush1.msra.mxu0 0.0
  %264 = vmatprep.subr.mxu0 0.0
  %265 = vmatpush1.msra.mxu0 0.0
  %266 = vmatprep.subr.mxu0 0.0
  %267 = vmatpush1.msra.mxu0 0.0
  %268 = vmatprep.subr.mxu0 0.0
  %269 = vmatpush1.msra.mxu0 0.0
  %270 = vmatprep.subr.mxu0 0.0
  %271 = vmatpush1.msra.mxu0 0.0
  %272 = vmatprep.subr.mxu0 0.0
  %273 = vmatpush1.msra.mxu0 0.0
  %274 = vmatprep.subr.mxu0 0.0
  %275 = vmatpush1.msra.mxu0 0.0
  %276 = vmatprep.subr.mxu0 0.0
  %277 = vmatpush1.msra.mxu0 0.0
  %278 = vmatprep.subr.mxu0 0.0
  %279 = vmatpush1.msra.mxu0 0.0
  %280 = vmatprep.subr.mxu0 0.0
  %281 = vmatpush1.msra.mxu0 0.0
  %282 = vmatprep.subr.mxu0 0.0
  %283 = vmatpush1.msra.mxu0 0.0
  %284 = vmatprep.subr.mxu0 0.0
  %285 = vmatpush1.msra.mxu0 0.0
  %286 = vmatprep.subr.mxu0 0.0
  %287 = vmatpush1.msra.mxu0 0.0
  %288 = vmatprep.subr.mxu0 0.0
  %289 = vmatpush1.msra.mxu0 0.0
  %290 = vmatprep.subr.mxu0 0.0
  %291 = vmatpush1.msra.mxu0 0.0
  %292 = vmatprep.subr.mxu0 0.0
  %293 = vmatpush1.msra.mxu0 0.0
  %294 = vmatprep.subr.mxu0 0.0
  %295 = vmatpush1.msra.mxu0 0.0
  %296 = vmatprep.subr.mxu0 0.0
  %297 = vmatpush1.msra.mxu0 0.0
  %298 = vmatprep.mubr.f32.mxu0 0.0
  %299 = vmatmul.mubr.f32.gmra.mrb[0].mxu0 %v228
  %v300 = vpop.f32.mrb[0].mxu0
  %v301 = vadd.f32 %v224, %v300
  %v302 = vpop.f32.mrb[0].mxu0
  %303 = vdwg.mxu0
  %v304 = vmax.f32 %v301, 0.0
  %v305 = vld [vmem:[%s4] sm:$0xff]
  %v306 = vld [vmem:[%s4 + $0x8] sm:$0xff]
  %v307 = vld [vmem:[%s4 + $0x10] sm:$0xff]
  %v308 = vld [vmem:[%s4 + $0x18] sm:$0xff]
  %v309 = vld [vmem:[%s4 + $0x20] sm:$0xff]
  %v310 = vld [vmem:[%s4 + $0x28] sm:$0xff]
  %v311 = vld [vmem:[%s4 + $0x30] sm:$0x3]
  %v313 = vlaneseq
  %v314 = vshrl.u32 %v313, 7
  %v315 = vsub.s32 0, %v314
  %v316 = vrot.slane %v26, %v315
  %v319 = vsel %vm128, %v304, 0
  %v322 = vsel %vm132, %v311, 0
  %324 = vmatprep.subr.mxu0 0.0
  %325 = vmatpush1.msra.mxu0 %v305
  %326 = vmatprep.subr.mxu0 0.0
  %327 = vmatpush1.msra.mxu0 %v306
  %328 = vmatprep.subr.mxu0 0.0
  %329 = vmatpush1.msra.mxu0 %v307
  %330 = vmatprep.subr.mxu0 0.0
  %331 = vmatpush1.msra.mxu0 %v308
  %332 = vmatprep.subr.mxu0 0.0
  %333 = vmatpush1.msra.mxu0 %v309
  %334 = vmatprep.subr.mxu0 0.0
  %335 = vmatpush1.msra.mxu0 %v310
  %336 = vmatprep.subr.mxu0 0.0
  %337 = vmatpush1.msra.mxu0 %v322
  %338 = vmatprep.subr.mxu0 0.0
  %339 = vmatpush1.msra.mxu0 0.0
  %340 = vmatprep.subr.mxu0 0.0
  %341 = vmatpush1.msra.mxu0 0.0
  %342 = vmatprep.subr.mxu0 0.0
  %343 = vmatpush1.msra.mxu0 0.0
  %344 = vmatprep.subr.mxu0 0.0
  %345 = vmatpush1.msra.mxu0 0.0
  %346 = vmatprep.subr.mxu0 0.0
  %347 = vmatpush1.msra.mxu0 0.0
  %348 = vmatprep.subr.mxu0 0.0
  %349 = vmatpush1.msra.mxu0 0.0
  %350 = vmatprep.subr.mxu0 0.0
  %351 = vmatpush1.msra.mxu0 0.0
  %352 = vmatprep.subr.mxu0 0.0
  %353 = vmatpush1.msra.mxu0 0.0
  %354 = vmatprep.subr.mxu0 0.0
  %355 = vmatpush1.msra.mxu0 0.0
  %356 = vmatprep.subr.mxu0 0.0
  %357 = vmatpush1.msra.mxu0 0.0
  %358 = vmatprep.subr.mxu0 0.0
  %359 = vmatpush1.msra.mxu0 0.0
  %360 = vmatprep.subr.mxu0 0.0
  %361 = vmatpush1.msra.mxu0 0.0
  %362 = vmatprep.subr.mxu0 0.0
  %363 = vmatpush1.msra.mxu0 0.0
  %364 = vmatprep.subr.mxu0 0.0
  %365 = vmatpush1.msra.mxu0 0.0
  %366 = vmatprep.subr.mxu0 0.0
  %367 = vmatpush1.msra.mxu0 0.0
  %368 = vmatprep.subr.mxu0 0.0
  %369 = vmatpush1.msra.mxu0 0.0
  %370 = vmatprep.subr.mxu0 0.0
  %371 = vmatpush1.msra.mxu0 0.0
  %372 = vmatprep.subr.mxu0 0.0
  %373 = vmatpush1.msra.mxu0 0.0
  %374 = vmatprep.subr.mxu0 0.0
  %375 = vmatpush1.msra.mxu0 0.0
  %376 = vmatprep.subr.mxu0 0.0
  %377 = vmatpush1.msra.mxu0 0.0
  %378 = vmatprep.subr.mxu0 0.0
  %379 = vmatpush1.msra.mxu0 0.0
  %380 = vmatprep.subr.mxu0 0.0
  %381 = vmatpush1.msra.mxu0 0.0
  %382 = vmatprep.subr.mxu0 0.0
  %383 = vmatpush1.msra.mxu0 0.0
  %384 = vmatprep.subr.mxu0 0.0
  %385 = vmatpush1.msra.mxu0 0.0
  %386 = vmatprep.subr.mxu0 0.0
  %387 = vmatpush1.msra.mxu0 0.0
  %388 = vmatprep.mubr.f32.mxu0 0.0
  %389 = vmatmul.mubr.f32.gmra.mrb[0].mxu0 %v319
  %v390 = vpop.f32.mrb[0].mxu0
  %v391 = vadd.f32 %v316, %v390
  %v392 = vpop.f32.mrb[0].mxu0
  %393 = vdwg.mxu0
  %v394 = vlaneseq
  %v395 = vand.u32 %v394, 127
  %vm396 = vcmp.ge.s32.totalorder %v395, 0
  %vm397 = vcmp.lt.s32.totalorder %v395, 5
  %vm398 = vmand %vm396, %vm397
  %vm399 = vcmp.ge.s32.totalorder %v395, 5
  %vm400 = vcmp.lt.s32.totalorder %v395, 10
  %vm401 = vmand %vm399, %vm400
  %v402 = vsel %vm398, %v391, -inf
  %vm403 = vcmask 121856
  %v404 = vsel %vm403, %v402, -inf
  %405 = vmax.xlane.f32.xlu0 %v404
  %v406 = vpop.xlane.xlu0 %405
  %v407 = vsel %vm398, %v406, 0.0
  %v408 = vsub.f32 %v391, %v407
  %v409 = vsel %vm401, 0.0, %v408
  %v410 = vmul.f32 %v409, 1.442695
  %v411 = vpow.pop %v410
  %v412 = vsel %vm398, %v411, 0.0
  %v413 = vsel %vm403, %v412, 0.0
  %414 = vadd.xlane.f32.xlu0 %v413
  %v415 = vpop.xlane.xlu0 %414
  %v416 = vrcp.pop %v415
  %v417 = vmul.f32 %v411, %v416
  %v418 = vsel %vm401, %v391, %v411
  %v419 = vsel %vm398, %v417, %v418
  %420 = vst.msk [vmem:[%s6] sm:$0xff] %vm403, %v419
  // Predicated region
  $region26: #{mdn_forward.1} parent=0 // pred_check
    _
  $region27: #{mdn_forward.1} parent=0 // pred_check_branch
    %422 = sbr.rel (0) target = $region29
  $region28: #{mdn_forward.1} parent=0 // pred_region
    _
  $region29: #{mdn_forward.1} parent=0 // pred_fallthru
    _
  // Predicated region
  $region30: #{mdn_forward.1} parent=0 // pred_check
    _
  $region31: #{mdn_forward.1} parent=0 // pred_check_branch
    %424 = sbr.rel (0) target = $region33
  $region32: #{mdn_forward.1} parent=0 // pred_region
    _
  $region33: #{mdn_forward.1} parent=0 // pred_fallthru
    _

</llo_original>
